<compile_context>
chip_gen: v5e
topology: v5e:2x2
jax: 0.10.0
libtpu: 0.0.40
codegen_flags: <defaults>
</compile_context>

<pallas_src>
import jax
import jax.numpy as jnp
from jax import lax
from jax.experimental import pallas as pl
from jax.experimental.pallas import tpu as pltpu

_EPS = 1e-8  # F.cosine_similarity eps


def _round_up(a, b):
    return ((a + b - 1) // b) * b


def _cdiv(a, b):
    return (a + b - 1) // b


def _make_kernel(true_s, s_blk, mask_tail):
    """Build the kernel specialized on (static) S, s_blk and tail masking."""

    def kernel(x_ref, y_ref, o_ref, dot_acc, xx_acc, yy_acc):
        s = pl.program_id(1)

        @pl.when(s == 0)
        def _():
            dot_acc[...] = jnp.zeros_like(dot_acc)
            xx_acc[...] = jnp.zeros_like(xx_acc)
            yy_acc[...] = jnp.zeros_like(yy_acc)

        x = x_ref[...].astype(jnp.float32)      # (row_blk, s_blk)
        y = y_ref[...].astype(jnp.float32)

        if mask_tail:
            # Ragged S tail handled in-kernel (cheap VPU work under the DMA
            # shadow) instead of padding the inputs in HBM.
            lane = lax.broadcasted_iota(jnp.int32, x.shape, 1)
            valid = (s * s_blk + lane) < true_s
            x = jnp.where(valid, x, 0.0)
            y = jnp.where(valid, y, 0.0)

        dot_acc[...] += jnp.sum(x * y, axis=-1, keepdims=True)   # (row_blk, 1)
        xx_acc[...] += jnp.sum(x * x, axis=-1, keepdims=True)
        yy_acc[...] += jnp.sum(y * y, axis=-1, keepdims=True)

        @pl.when(s == pl.num_programs(1) - 1)
        def _():
            # 1 / max(||x||, eps) == rsqrt(max(||x||^2, eps^2)); EUP, no divide.
            inv_nx = lax.rsqrt(jnp.maximum(xx_acc[...], _EPS * _EPS))
            inv_ny = lax.rsqrt(jnp.maximum(yy_acc[...], _EPS * _EPS))
            o_ref[...] = dot_acc[...] * inv_nx * inv_ny           # per-row cosine

    return kernel


def cosine_similarity_channelwise_loss(x, y, reduction='mean',
                                       row_blk=512, s_blk=2048):
    """x, y: (N, C, H, W) arrays (f32 or bf16). Returns a scalar f32 loss."""
    assert reduction in ('mean', 'sum', 'max')
    assert x.shape == y.shape
    N, C, H, W = x.shape
    R, S = N * C, H * W

    # Contiguous, transpose-free flatten: (N, C, H, W) -> (N*C, S). No pad.
    x2 = x.reshape(R, S)
    y2 = y.reshape(R, S)

    # Lane tile: full dim if it fits in one block (allowed even when not a
    # multiple of 128); otherwise a 128-aligned block + in-kernel tail mask.
    if S <= s_blk:
        s_blk = S
    mask_tail = (S % s_blk) != 0

    # Row tile: aim for >=2 row tiles so the "parallel" axis can shard across
    # v7x's two TensorCores; 8-aligned unless a single block covers the dim.
    row_blk = min(row_blk, _round_up(_cdiv(R, 2), 8))
    if row_blk >= R:
        row_blk = R                   # single full-dim block

    n_row_tiles = _cdiv(R, row_blk)
    n_s_tiles = _cdiv(S, s_blk)
    R_out = n_row_tiles * row_blk     # avoid partial output blocks
    grid = (n_row_tiles, n_s_tiles)

    itemsize = jnp.dtype(x.dtype).itemsize
    cost = pl.CostEstimate(
        flops=6 * R * S,
        transcendentals=2 * R,
        bytes_accessed=2 * R * S * itemsize + 4 * R,
    )

    per_row = pl.pallas_call(
        _make_kernel(S, s_blk, mask_tail),
        out_shape=jax.ShapeDtypeStruct((R_out, 1), jnp.float32),
        grid_spec=pltpu.PrefetchScalarGridSpec(
            num_scalar_prefetch=0,
            grid=grid,
            in_specs=[
                pl.BlockSpec((row_blk, s_blk), lambda r, s: (r, s)),
                pl.BlockSpec((row_blk, s_blk), lambda r, s: (r, s)),
            ],
            out_specs=pl.BlockSpec((row_blk, 1), lambda r, s: (r, 0)),
            scratch_shapes=[
                pltpu.VMEM((row_blk, 1), jnp.float32),  # sum(x*y)
                pltpu.VMEM((row_blk, 1), jnp.float32),  # sum(x*x)
                pltpu.VMEM((row_blk, 1), jnp.float32),  # sum(y*y)
            ],
        ),
        compiler_params=pltpu.CompilerParams(
            dimension_semantics=("parallel", "arbitrary"),
            vmem_limit_bytes=32 * 1024 * 1024,
        ),
        cost_estimate=cost,
    )(x2, y2)

    # Tiny epilogue in JAX: drop overrun rows, (N*C,) cosines -> per-channel
    # mean -> final reduction.
    cos = per_row[:R, 0].reshape(N, C)          # cos[n, c]
    per_channel = jnp.mean(cos, axis=0)         # (C,)
    if reduction == 'mean':
        return jnp.mean(per_channel)
    elif reduction == 'sum':
        return jnp.sum(per_channel)
    return jnp.max(per_channel)


def _reference(x, y, reduction):
    """Pure-JAX reference mirroring the PyTorch module."""
    N, C, H, W = x.shape
    xc = jnp.transpose(x, (1, 0, 2, 3)).reshape(C, N, -1)
    yc = jnp.transpose(y, (1, 0, 2, 3)).reshape(C, N, -1)
    dot = jnp.sum(xc * yc, axis=-1)
    nx = jnp.maximum(jnp.sqrt(jnp.sum(xc * xc, axis=-1)), _EPS)
    ny = jnp.maximum(jnp.sqrt(jnp.sum(yc * yc, axis=-1)), _EPS)
    per_channel = jnp.mean(dot / (nx * ny), axis=1)
    if reduction == 'mean':
        return jnp.mean(per_channel)
    elif reduction == 'sum':
        return jnp.sum(per_channel)
    return jnp.max(per_channel)


if __name__ == "__main__":
    key = jax.random.PRNGKey(0)
    k1, k2, k3, k4, k5, k6 = jax.random.split(key, 6)
    ok = True

    # Small NCHW feature maps, all three reductions.
    x = jax.random.normal(k1, (2, 4, 16, 16), dtype=jnp.float32)
    y = jax.random.normal(k2, (2, 4, 16, 16), dtype=jnp.float32)
    for reduction in ('mean', 'sum', 'max'):
        out = jax.block_until_ready(
            cosine_similarity_channelwise_loss(x, y, reduction=reduction))
        ref = _reference(x, y, reduction)
        if not bool(jnp.allclose(out, ref, atol=1e-5, rtol=1e-5)):
            ok = False
            print(f"MISMATCH reduction={reduction}: kernel={out} ref={ref}")

    # Exercise the no-pad ragged paths: R=12 (row-overrun last block) and
    # S=2304 (> s_blk=2048, in-kernel lane masking on the tail block).
    xr = jax.random.normal(k3, (3, 4, 48, 48), dtype=jnp.float32)
    yr = jax.random.normal(k4, (3, 4, 48, 48), dtype=jnp.float32)
    out_r = jax.block_until_ready(
        cosine_similarity_channelwise_loss(xr, yr, reduction='mean'))
    ref_r = _reference(xr, yr, 'mean')
    if not bool(jnp.allclose(out_r, ref_r, atol=1e-5, rtol=1e-5)):
        ok = False
        print(f"MISMATCH ragged: kernel={out_r} ref={ref_r}")

    # bf16 inputs with tiny spatial (S=49, non-128-aligned full-dim block).
    xb = jax.random.normal(k5, (2, 4, 7, 7), dtype=jnp.bfloat16)
    yb = jax.random.normal(k6, (2, 4, 7, 7), dtype=jnp.bfloat16)
    out_b = jax.block_until_ready(
        cosine_similarity_channelwise_loss(xb, yb, reduction='mean'))
    ref_b = _reference(xb.astype(jnp.float32), yb.astype(jnp.float32), 'mean')
    if not bool(jnp.allclose(out_b, ref_b, atol=1e-2, rtol=1e-2)):
        ok = False
        print(f"MISMATCH bf16/small-S: kernel={out_b} ref={ref_b}")

    if ok:
        print("KERNEL_OK")
</pallas_src>

<mosaic_0001>
module attributes {stable_mosaic.version = 11 : i64} {
  func.func @kernel(%arg0: i32, %arg1: i32, %arg2: memref<8x256xf32, #tpu.memory_space<vmem>>, %arg3: memref<8x256xf32, #tpu.memory_space<vmem>>, %arg4: memref<8x1xf32, #tpu.memory_space<vmem>>, %arg5: memref<8x1xf32, #tpu.memory_space<vmem>>, %arg6: memref<8x1xf32, #tpu.memory_space<vmem>>, %arg7: memref<8x1xf32, #tpu.memory_space<vmem>>) attributes {dimension_semantics = [#tpu.dimension_semantics<parallel>, #tpu.dimension_semantics<arbitrary>], iteration_bounds = array<i64: 1, 1>, scalar_prefetch = 0 : i64, scratch_operands = 3 : i64, tpu.core_type = #tpu.core_type<tc>, window_params = [{transform_indices = @transform_0, window_bounds = array<i64: 8, 256>}, {transform_indices = @transform_1, window_bounds = array<i64: 8, 256>}, {transform_indices = @transform_2, window_bounds = array<i64: 8, 1>}]} {
    %c0_i32 = arith.constant 0 : i32
    %0 = arith.cmpi eq, %arg1, %c0_i32 : i32
    %1 = arith.extui %0 : i1 to i32
    %c0_i32_0 = arith.constant 0 : i32
    %2 = arith.cmpi ne, %1, %c0_i32_0 : i32
    scf.if %2 {
      %cst_20 = arith.constant 0.000000e+00 : f32
      %26 = vector.broadcast %cst_20 : f32 to vector<8x1xf32>
      %c0_21 = arith.constant 0 : index
      %c0_22 = arith.constant 0 : index
      %27 = vector.load %arg5[%c0_21, %c0_22] : memref<8x1xf32, #tpu.memory_space<vmem>>, vector<8x1xf32>
      tpu.vector_store %arg5[%c0_21, %c0_22], %26 {strides = array<i32>} : memref<8x1xf32, #tpu.memory_space<vmem>>, vector<8x1xf32>,
      %cst_23 = arith.constant 0.000000e+00 : f32
      %28 = vector.broadcast %cst_23 : f32 to vector<8x1xf32>
      %c0_24 = arith.constant 0 : index
      %c0_25 = arith.constant 0 : index
      %29 = vector.load %arg6[%c0_24, %c0_25] : memref<8x1xf32, #tpu.memory_space<vmem>>, vector<8x1xf32>
      tpu.vector_store %arg6[%c0_24, %c0_25], %28 {strides = array<i32>} : memref<8x1xf32, #tpu.memory_space<vmem>>, vector<8x1xf32>,
      %cst_26 = arith.constant 0.000000e+00 : f32
      %30 = vector.broadcast %cst_26 : f32 to vector<8x1xf32>
      %c0_27 = arith.constant 0 : index
      %c0_28 = arith.constant 0 : index
      %31 = vector.load %arg7[%c0_27, %c0_28] : memref<8x1xf32, #tpu.memory_space<vmem>>, vector<8x1xf32>
      tpu.vector_store %arg7[%c0_27, %c0_28], %30 {strides = array<i32>} : memref<8x1xf32, #tpu.memory_space<vmem>>, vector<8x1xf32>,
    } else {
    }
    %c0 = arith.constant 0 : index
    %c0_1 = arith.constant 0 : index
    %3 = vector.load %arg2[%c0, %c0_1] : memref<8x256xf32, #tpu.memory_space<vmem>>, vector<8x256xf32>
    %c0_2 = arith.constant 0 : index
    %c0_3 = arith.constant 0 : index
    %4 = vector.load %arg3[%c0_2, %c0_3] : memref<8x256xf32, #tpu.memory_space<vmem>>, vector<8x256xf32>
    %c0_4 = arith.constant 0 : index
    %c0_5 = arith.constant 0 : index
    %5 = vector.load %arg5[%c0_4, %c0_5] : memref<8x1xf32, #tpu.memory_space<vmem>>, vector<8x1xf32>
    %6 = arith.mulf %3, %4 : vector<8x256xf32>
    %cst = arith.constant dense<0.000000e+00> : vector<8xf32>
    %7 = vector.multi_reduction <add>, %6, %cst [1] : vector<8x256xf32> to vector<8xf32>
    %8 = vector.shape_cast %7 : vector<8xf32> to vector<8x1xf32>
    %9 = arith.addf %5, %8 : vector<8x1xf32>
    %c0_6 = arith.constant 0 : index
    %c0_7 = arith.constant 0 : index
    %10 = vector.load %arg5[%c0_6, %c0_7] : memref<8x1xf32, #tpu.memory_space<vmem>>, vector<8x1xf32>
    tpu.vector_store %arg5[%c0_6, %c0_7], %9 {strides = array<i32>} : memref<8x1xf32, #tpu.memory_space<vmem>>, vector<8x1xf32>,
    %c0_8 = arith.constant 0 : index
    %c0_9 = arith.constant 0 : index
    %11 = vector.load %arg6[%c0_8, %c0_9] : memref<8x1xf32, #tpu.memory_space<vmem>>, vector<8x1xf32>
    %12 = arith.mulf %3, %3 : vector<8x256xf32>
    %cst_10 = arith.constant dense<0.000000e+00> : vector<8xf32>
    %13 = vector.multi_reduction <add>, %12, %cst_10 [1] : vector<8x256xf32> to vector<8xf32>
    %14 = vector.shape_cast %13 : vector<8xf32> to vector<8x1xf32>
    %15 = arith.addf %11, %14 : vector<8x1xf32>
    %c0_11 = arith.constant 0 : index
    %c0_12 = arith.constant 0 : index
    %16 = vector.load %arg6[%c0_11, %c0_12] : memref<8x1xf32, #tpu.memory_space<vmem>>, vector<8x1xf32>
    tpu.vector_store %arg6[%c0_11, %c0_12], %15 {strides = array<i32>} : memref<8x1xf32, #tpu.memory_space<vmem>>, vector<8x1xf32>,
    %c0_13 = arith.constant 0 : index
    %c0_14 = arith.constant 0 : index
    %17 = vector.load %arg7[%c0_13, %c0_14] : memref<8x1xf32, #tpu.memory_space<vmem>>, vector<8x1xf32>
    %18 = arith.mulf %4, %4 : vector<8x256xf32>
    %cst_15 = arith.constant dense<0.000000e+00> : vector<8xf32>
    %19 = vector.multi_reduction <add>, %18, %cst_15 [1] : vector<8x256xf32> to vector<8xf32>
    %20 = vector.shape_cast %19 : vector<8xf32> to vector<8x1xf32>
    %21 = arith.addf %17, %20 : vector<8x1xf32>
    %c0_16 = arith.constant 0 : index
    %c0_17 = arith.constant 0 : index
    %22 = vector.load %arg7[%c0_16, %c0_17] : memref<8x1xf32, #tpu.memory_space<vmem>>, vector<8x1xf32>
    tpu.vector_store %arg7[%c0_16, %c0_17], %21 {strides = array<i32>} : memref<8x1xf32, #tpu.memory_space<vmem>>, vector<8x1xf32>,
    %c0_i32_18 = arith.constant 0 : i32
    %23 = arith.cmpi eq, %arg1, %c0_i32_18 : i32
    %24 = arith.extui %23 : i1 to i32
    %c0_i32_19 = arith.constant 0 : i32
    %25 = arith.cmpi ne, %24, %c0_i32_19 : i32
    scf.if %25 {
      %c0_20 = arith.constant 0 : index
      %c0_21 = arith.constant 0 : index
      %26 = vector.load %arg6[%c0_20, %c0_21] : memref<8x1xf32, #tpu.memory_space<vmem>>, vector<8x1xf32>
      %cst_22 = arith.constant 1.000000e-16 : f32
      %27 = vector.broadcast %cst_22 : f32 to vector<8x1xf32>
      %28 = arith.maximumf %26, %27 : vector<8x1xf32>
      %29 = math.rsqrt %28 : vector<8x1xf32>
      %c0_23 = arith.constant 0 : index
      %c0_24 = arith.constant 0 : index
      %30 = vector.load %arg7[%c0_23, %c0_24] : memref<8x1xf32, #tpu.memory_space<vmem>>, vector<8x1xf32>
      %cst_25 = arith.constant 1.000000e-16 : f32
      %31 = vector.broadcast %cst_25 : f32 to vector<8x1xf32>
      %32 = arith.maximumf %30, %31 : vector<8x1xf32>
      %33 = math.rsqrt %32 : vector<8x1xf32>
      %c0_26 = arith.constant 0 : index
      %c0_27 = arith.constant 0 : index
      %34 = vector.load %arg5[%c0_26, %c0_27] : memref<8x1xf32, #tpu.memory_space<vmem>>, vector<8x1xf32>
      %35 = arith.mulf %34, %29 : vector<8x1xf32>
      %36 = arith.mulf %35, %33 : vector<8x1xf32>
      %c0_28 = arith.constant 0 : index
      %c0_29 = arith.constant 0 : index
      %37 = vector.load %arg4[%c0_28, %c0_29] : memref<8x1xf32, #tpu.memory_space<vmem>>, vector<8x1xf32>
      tpu.vector_store %arg4[%c0_28, %c0_29], %36 {strides = array<i32>} : memref<8x1xf32, #tpu.memory_space<vmem>>, vector<8x1xf32>,
    } else {
    }
    return
  }
  func.func @transform_0(%arg0: i32, %arg1: i32) -> (i32, i32) {
    %c0_i32 = arith.constant 0 : i32
    return %arg0, %arg1 : i32, i32
  }
  func.func @transform_1(%arg0: i32, %arg1: i32) -> (i32, i32) {
    %c0_i32 = arith.constant 0 : i32
    return %arg0, %arg1 : i32, i32
  }
  func.func @transform_2(%arg0: i32, %arg1: i32) -> (i32, i32) {
    %c0_i32 = arith.constant 0 : i32
    %c0_i32_0 = arith.constant 0 : i32
    return %arg0, %c0_i32 : i32, i32
  }
}

</mosaic_0001>

<llo_original>
// kernel: tpu_custom_call.1
$region0: #{tpu_custom_call.1}
  #allocation0 [shape = 'u32[]', space=smem, size = 0x4, offset = 0x4, fixed_abs, tag = 'smem constant byte address 0x4 - core index']
  #allocation1 [shape = 'u32[72,128]{1,0:T(1,128)}', space=vmem, size = 0x9000, scoped, tag = 'internal scratch']
  #allocation2 [shape = 'f32[8,1]{1,0:T(8,128)}', space=vmem, size = 0x1000, scoped, tag = 'scratch operand']
  #allocation3 [shape = 'f32[8,1]{1,0:T(8,128)}', space=vmem, size = 0x1000, scoped, tag = 'scratch operand']
  #allocation4 [shape = 'f32[8,1]{1,0:T(8,128)}', space=vmem, size = 0x1000, scoped, tag = 'scratch operand']
  %s0 = inlined_call_operand.hbm [shape: f32[8,256], index: 0, kind: input, shape index: {}]
  %s1 = inlined_call_operand.hbm [shape: f32[8,256], index: 1, kind: input, shape index: {}]
  %s2 = inlined_call_operand.vmem [shape: f32[8,1], index: 2, kind: output, shape index: {}]
  %s3 = sld [smem:[#allocation0]]
  $region34: #{tpu_custom_call.1} parent=0
    _
  %s5 = ssub.s32 1, %s3
  %s6 = scalar_select 0, %s5, %s3
  $region1: #{tpu_custom_call.1} parent=0
    #allocation5 [shape = 'u8[8192]{0}', space=vmem, size = 0x2000, scoped, tag = 'input window, operand 0, single buffered']
    #allocation6 [shape = 's32[1]{0}', space=sflag, size = 0x4, scoped, tag = 'scoped memory for tpu_custom_call.1']
    #allocation7 [shape = 'u8[8192]{0}', space=vmem, size = 0x2000, scoped, tag = 'input window, operand 1, single buffered']
    #allocation8 [shape = 's32[1]{0}', space=sflag, size = 0x4, scoped, tag = 'scoped memory for tpu_custom_call.1']
    %7 = vsyncpa [#allocation6], 0
    %8 = vsyncpa [#allocation8], 0
    // Predicated region
    $region2: #{tpu_custom_call.1} parent=1 // pred_check
      _
    $region3: #{tpu_custom_call.1} parent=1 // pred_check_branch
      %10 = sbr.rel (0) target = $region5
    $region4: #{tpu_custom_call.1} parent=1 // pred_region
      %12 = vsyncadd [#allocation6], 0
      %s14 = sshll.u32 %s0, 4
      %s15 = int_to_ptr.hbm [resolvable:$true] %s14
      %s16 = sshll.u32 [#allocation5], 4
      %s17 = int_to_ptr.vmem [resolvable:$true] %s16
      %19 = dma.hbm_to_vmem [thread:$0]  %s15, 256, %s17, [#allocation6]
    $region5: #{tpu_custom_call.1} parent=1 // pred_fallthru
      _
    // Predicated region
    $region6: #{tpu_custom_call.1} parent=1 // pred_check
      _
    $region7: #{tpu_custom_call.1} parent=1 // pred_check_branch
      %21 = sbr.rel (0) target = $region9
    $region8: #{tpu_custom_call.1} parent=1 // pred_region
      %23 = vsyncadd [#allocation8], 0
      %s25 = sshll.u32 %s1, 4
      %s26 = int_to_ptr.hbm [resolvable:$true] %s25
      %s27 = sshll.u32 [#allocation7], 4
      %s28 = int_to_ptr.vmem [resolvable:$true] %s27
      %30 = dma.hbm_to_vmem [thread:$0]  %s26, 256, %s28, [#allocation8]
    $region9: #{tpu_custom_call.1} parent=1 // pred_fallthru
      _
    // Predicated region
    $region10: #{tpu_custom_call.1} parent=1 // pred_check
      _
    $region11: #{tpu_custom_call.1} parent=1 // pred_check_branch
      %32 = sbr.rel (0) target = $region13
    $region12: #{tpu_custom_call.1} parent=1 // pred_region
      %34 = dma.done [#allocation6], 256
    $region13: #{tpu_custom_call.1} parent=1 // pred_fallthru
      _
    // Predicated region
    $region14: #{tpu_custom_call.1} parent=1 // pred_check
      _
    $region15: #{tpu_custom_call.1} parent=1 // pred_check_branch
      %36 = sbr.rel (0) target = $region17
    $region16: #{tpu_custom_call.1} parent=1 // pred_region
      %38 = dma.done [#allocation8], 256
    $region17: #{tpu_custom_call.1} parent=1 // pred_fallthru
      _
    %p39 = scmp.eq.s32.totalorder 0, 0
    // Predicated region
    $region18: #{tpu_custom_call.1} parent=1 // pred_check
      %p40 = pneg %p39
    $region19: #{tpu_custom_call.1} parent=1 // pred_check_branch
      %42 = sbr.rel (%p40) target = $region21
    $region20: #{tpu_custom_call.1} parent=1 // pred_region
      %vm43 = vcmask 7168
      %44 = vst.msk [vmem:[#allocation2] sm:$0xff] %vm43, 0.0
      %45 = vst.msk [vmem:[#allocation3] sm:$0xff] %vm43, 0.0
      %46 = vst.msk [vmem:[#allocation4] sm:$0xff] %vm43, 0.0
    $region21: #{tpu_custom_call.1} parent=1 // pred_fallthru
      _
    %v47 = vld [vmem:[#allocation5] sm:$0xff]
    %v48 = vld [vmem:[#allocation5 + $0x8] sm:$0xff]
    %v49 = vld [vmem:[#allocation7] sm:$0xff]
    %v50 = vld [vmem:[#allocation7 + $0x8] sm:$0xff]
    %v51 = vld [vmem:[#allocation2] sm:$0xff]
    %v52 = vmul.f32 %v47, %v49
    %v53 = vmul.f32 %v48, %v50
    %v54 = vadd.f32 %v52, %v53
    %55 = vadd.xlane.f32.xlu0 %v54
    %v56 = vpop.xlane.xlu0 %55
    %v57 = vadd.f32 %v51, %v56
    %vm58 = vcmask 7168
    %59 = vst.msk [vmem:[#allocation2] sm:$0xff] %vm58, %v57
    %v60 = vld [vmem:[#allocation3] sm:$0xff]
    %v61 = vmul.f32 %v47, %v47
    %v62 = vmul.f32 %v48, %v48
    %v63 = vadd.f32 %v61, %v62
    %64 = vadd.xlane.f32.xlu0 %v63
    %v65 = vpop.xlane.xlu0 %64
    %v66 = vadd.f32 %v60, %v65
    %67 = vst.msk [vmem:[#allocation3] sm:$0xff] %vm58, %v66
    %v68 = vld [vmem:[#allocation4] sm:$0xff]
    %v69 = vmul.f32 %v49, %v49
    %v70 = vmul.f32 %v50, %v50
    %v71 = vadd.f32 %v69, %v70
    %72 = vadd.xlane.f32.xlu0 %v71
    %v73 = vpop.xlane.xlu0 %72
    %v74 = vadd.f32 %v68, %v73
    %75 = vst.msk [vmem:[#allocation4] sm:$0xff] %vm58, %v74
    // Predicated region
    $region22: #{tpu_custom_call.1} parent=1 // pred_check
      %p76 = pneg %p39
    $region23: #{tpu_custom_call.1} parent=1 // pred_check_branch
      %78 = sbr.rel (%p76) target = $region25
    $region24: #{tpu_custom_call.1} parent=1 // pred_region
      %v79 = vld [vmem:[#allocation3] sm:$0xff]
      %v80 = vmax.f32 %v79, 1e-16
      %v81 = vrsqrt.pop %v80
      %v82 = vmul.f32 %v81, %v80
      %v83 = vmul.f32 %v82, %v81
      %v84 = vmul.f32 0.5, %v83
      %v85 = vsub.f32 1.5, %v84
      %v86 = vmul.f32 %v81, %v85
      %vm87 = vweird.f32 %v80
      %vm88 = vweird.f32 %v81
      %vm89 = vmor %vm87, %vm88
      %v90 = vsel %vm89, %v81, %v86
      %v91 = vld [vmem:[#allocation4] sm:$0xff]
      %v92 = vmax.f32 %v91, 1e-16
      %v93 = vrsqrt.pop %v92
      %v94 = vmul.f32 %v93, %v92
      %v95 = vmul.f32 %v94, %v93
      %v96 = vmul.f32 0.5, %v95
      %v97 = vsub.f32 1.5, %v96
      %v98 = vmul.f32 %v93, %v97
      %vm99 = vweird.f32 %v92
      %vm100 = vweird.f32 %v93
      %vm101 = vmor %vm99, %vm100
      %v102 = vsel %vm101, %v93, %v98
      %v103 = vld [vmem:[#allocation2] sm:$0xff]
      %v104 = vmul.f32 %v103, %v90
      %v105 = vmul.f32 %v104, %v102
      %106 = vst.msk [vmem:[%s2] sm:$0xff] %vm58, %v105
    $region25: #{tpu_custom_call.1} parent=1 // pred_fallthru
      _
    // Predicated region
    $region26: #{tpu_custom_call.1} parent=1 // pred_check
      _
    $region27: #{tpu_custom_call.1} parent=1 // pred_check_branch
      %108 = sbr.rel (0) target = $region29
    $region28: #{tpu_custom_call.1} parent=1 // pred_region
      _
    $region29: #{tpu_custom_call.1} parent=1 // pred_fallthru
      _
    // Predicated region
    $region30: #{tpu_custom_call.1} parent=1 // pred_check
      _
    $region31: #{tpu_custom_call.1} parent=1 // pred_check_branch
      %110 = sbr.rel (0) target = $region33
    $region32: #{tpu_custom_call.1} parent=1 // pred_region
      _
    $region33: #{tpu_custom_call.1} parent=1 // pred_fallthru
      _
    %111 = vsyncpa [#allocation6], 1
    %112 = vsyncpa [#allocation8], 1

</llo_original>
